<compile_context>
chip_gen: v7x
topology: tpu7x:2x2x1
jax: 0.10.0
libtpu: 0.0.40
codegen_flags: <defaults>
</compile_context>

<pallas_src>
import functools
import math

import jax
import jax.numpy as jnp
from jax.experimental import pallas as pl
from jax.experimental.pallas import tpu as pltpu

LANE = 128
BATCH_ALIGN = 16  # sublane alignment that is safe for f32 and bf16 tiles


def _pad_to(n, m):
    return ((n + m - 1) // m) * m


def _cdiv(a, b):
    return -(-a // b)


# ----------------------------------------------------------------------------
# Fused kernel: h = x; for each layer: h = relu(h @ W_l + b_l); store h.
# Weights are BN-folded and pre-cast on the host (default bf16).  Hidden
# feature widths are zero-padded to multiples of 128 (lane-dense layouts,
# unmasked full-lane stores); padded weight rows/cols and bias entries are
# zero, so padded activation columns stay exactly 0 and never perturb the
# true outputs.  The first layer's input axis keeps the true in_features.
# ----------------------------------------------------------------------------
def _make_fused_kernel(n_layers, act_dtype):
    def kernel(*refs):
        x_ref = refs[0]
        w_refs = refs[1:1 + n_layers]
        b_ref = refs[1 + n_layers]
        o_ref = refs[2 + n_layers]

        h = x_ref[...].astype(act_dtype)          # single input cast per tile
        for l in range(n_layers):
            w = w_refs[l][...]                    # already act_dtype (no cast)
            n = w.shape[1]                        # padded output width (x128)
            y = jnp.dot(h, w, preferred_element_type=jnp.float32)
            y = jnp.maximum(y + b_ref[l:l + 1, :n], 0.0)   # +bias, ReLU
            if l + 1 < n_layers:
                h = y.astype(act_dtype)           # keep intermediates narrow
            else:
                o_ref[...] = y.astype(o_ref.dtype)
    return kernel


def _fused_call(x_pad, padded_ws, packed_b, tile_b):
    """One pallas_call over batch tiles; weights/bias resident across tiles."""
    B_pad, K_in = x_pad.shape
    n_layers = len(padded_ws)
    n_out_pad = padded_ws[-1].shape[1]
    grid = (B_pad // tile_b,)

    in_specs = [pl.BlockSpec((tile_b, K_in), lambda i: (i, 0))]
    for w in padded_ws:
        in_specs.append(pl.BlockSpec(w.shape, lambda i: (0, 0)))
    in_specs.append(pl.BlockSpec(packed_b.shape, lambda i: (0, 0)))

    return pl.pallas_call(
        _make_fused_kernel(n_layers, padded_ws[0].dtype),
        out_shape=jax.ShapeDtypeStruct((B_pad, n_out_pad), jnp.float32),
        grid=grid,
        in_specs=in_specs,
        out_specs=pl.BlockSpec((tile_b, n_out_pad), lambda i: (i, 0)),
        compiler_params=pltpu.CompilerParams(
            dimension_semantics=("parallel",),      # independent batch tiles
            vmem_limit_bytes=48 * 1024 * 1024,      # explicit, < 64 MiB (v7x)
        ),
    )(x_pad, *padded_ws, packed_b)


def _choose_batch_tiling(B, tile_b):
    """Pad B only to a multiple of 16; pick a tile that divides it exactly.

    Guarantees >= 2 grid tiles once the batch is large enough so the
    "parallel" axis can shard across v7x's two TensorCores.
    """
    b16 = _pad_to(max(B, 1), BATCH_ALIGN)
    n_tiles = _cdiv(b16, tile_b)
    if b16 >= 512:                       # enough rows to feed 2 TensorCores
        n_tiles = max(n_tiles, 2)
    tb = _pad_to(_cdiv(b16, n_tiles), BATCH_ALIGN)
    return n_tiles * tb, tb


@functools.partial(jax.jit, static_argnames=("out_width", "tile_b"))
def ann_blocks_forward(x, padded_ws, packed_b, *, out_width, tile_b=1024):
    """Full 6-layer ANN_Blocks forward (eval mode) via one fused Pallas call."""
    B, _ = x.shape
    B_pad, tb = _choose_batch_tiling(B, tile_b)
    if B_pad != B:
        x = jnp.pad(x, ((0, B_pad - B), (0, 0)))   # sublane-granularity pad only
    out = _fused_call(x, list(padded_ws), packed_b, tb)
    return out[:B, :out_width]


# ----------------------------------------------------------------------------
# Parameter construction (deterministic, PyTorch-default-like init) and
# host-side BatchNorm folding + lane padding + weight dtype cast.
# ----------------------------------------------------------------------------
def init_ann_blocks_params(key, in_features, out_features=16):
    """Raw per-layer (W, b, scale, shift) with BN eval-mode running stats."""
    dims = [in_features, 512, 256, 128, 64, 32, out_features]
    eps = 1e-5
    params = []
    for li in range(len(dims) - 1):
        fin, fout = dims[li], dims[li + 1]
        key, kw, kb, kg, kbeta, km, kv = jax.random.split(key, 7)
        bound = 1.0 / math.sqrt(fin)
        # Linear params, stored as (in, out) for x @ W.
        w = jax.random.uniform(kw, (fin, fout), jnp.float32, -bound, bound)
        b = jax.random.uniform(kb, (1, fout), jnp.float32, -bound, bound)
        # BatchNorm1d affine params + running stats (eval mode).
        gamma = jax.random.uniform(kg, (1, fout), jnp.float32, 0.5, 1.5)
        beta = jax.random.uniform(kbeta, (1, fout), jnp.float32, -0.1, 0.1)
        run_mean = jax.random.uniform(km, (1, fout), jnp.float32, -0.1, 0.1)
        run_var = jax.random.uniform(kv, (1, fout), jnp.float32, 0.5, 1.5)
        # Fold BN into per-feature affine: y_bn = y * scale + shift.
        scale = gamma / jnp.sqrt(run_var + eps)
        shift = beta - run_mean * scale
        params.append((w, b, scale, shift))
    return params


def fold_and_pad_params(params, weight_dtype=jnp.bfloat16):
    """Fold BN into W/b, zero-pad feature dims to x128, pre-cast weights.

    The first layer's input axis is kept unpadded (x keeps its true width);
    hidden/out feature axes are padded to multiples of 128.  Bias stays f32.
    """
    max_out_pad = _pad_to(max(w.shape[1] for (w, _, _, _) in params), LANE)
    padded_ws, bias_rows = [], []
    for li, (w, b, scale, shift) in enumerate(params):
        fin, fout = w.shape
        w_f = w * scale                      # fold BN scale into weight cols
        b_f = (b * scale + shift)[0]         # fold Linear bias + BN shift
        fin_p = fin if li == 0 else _pad_to(fin, LANE)
        fout_p = _pad_to(fout, LANE)
        w_p = jnp.zeros((fin_p, fout_p), jnp.float32).at[:fin, :fout].set(w_f)
        padded_ws.append(w_p.astype(weight_dtype))   # host-side pre-cast
        bias_rows.append(
            jnp.zeros((max_out_pad,), jnp.float32).at[:fout].set(b_f))
    packed_b = jnp.stack(bias_rows, axis=0)  # (num_layers, 512), f32
    return padded_ws, packed_b


# ----------------------------------------------------------------------------
if __name__ == "__main__":
    key = jax.random.PRNGKey(0)
    k_in, k_in2, k_param = jax.random.split(key, 3)

    batch = 8
    in_features = 32
    out_features = 16

    params = init_ann_blocks_params(k_param, in_features, out_features)
    padded_ws, packed_b = fold_and_pad_params(params)          # bf16 weights

    def ref_bf16(xv):
        """Matched-precision reference (bf16 matmul inputs, f32 accumulation)."""
        h = xv
        for (w, b, scale, shift) in params:
            wf = (w * scale).astype(jnp.bfloat16)
            bf = b * scale + shift
            h = jnp.maximum(
                jnp.dot(h.astype(jnp.bfloat16), wf,
                        preferred_element_type=jnp.float32) + bf, 0.0)
        return h

    def ref_f32(xv):
        """Exact eval-mode reference on the raw (unfolded, unpadded) params."""
        h = xv
        for (w, b, scale, shift) in params:
            h = jnp.maximum((h @ w + b) * scale + shift, 0.0)
        return h

    # --- small batch, single tile ---
    x = jax.random.normal(k_in, (batch, in_features), jnp.float32)
    out = ann_blocks_forward(x, tuple(padded_ws), packed_b,
                             out_width=out_features)
    out = jax.block_until_ready(out)
    assert out.shape == (batch, out_features), out.shape
    r = ref_bf16(x)
    assert jnp.allclose(out, r, atol=2e-2, rtol=2e-2), \
        float(jnp.max(jnp.abs(out - r)))
    # Loose sanity check against the exact f32 model (validates BN folding).
    rf = ref_f32(x)
    assert jnp.allclose(out, rf, atol=1e-1, rtol=1e-1), \
        float(jnp.max(jnp.abs(out - rf)))

    # --- multi-tile grid path (exercises batch tiling / index maps) ---
    batch2, tile2 = 48, 16
    x2 = jax.random.normal(k_in2, (batch2, in_features), jnp.float32)
    out2 = ann_blocks_forward(x2, tuple(padded_ws), packed_b,
                              out_width=out_features, tile_b=tile2)
    out2 = jax.block_until_ready(out2)
    assert out2.shape == (batch2, out_features), out2.shape
    r2 = ref_bf16(x2)
    assert jnp.allclose(out2, r2, atol=2e-2, rtol=2e-2), \
        float(jnp.max(jnp.abs(out2 - r2)))

    print("KERNEL_OK")
</pallas_src>

<mosaic_0001>
module attributes {stable_mosaic.version = 11 : i64} {
  func.func @kernel(%arg0: i32, %arg1: memref<16x32xf32, #tpu.memory_space<vmem>>, %arg2: memref<32x512xbf16, #tpu.memory_space<vmem>>, %arg3: memref<512x256xbf16, #tpu.memory_space<vmem>>, %arg4: memref<256x128xbf16, #tpu.memory_space<vmem>>, %arg5: memref<128x128xbf16, #tpu.memory_space<vmem>>, %arg6: memref<128x128xbf16, #tpu.memory_space<vmem>>, %arg7: memref<128x128xbf16, #tpu.memory_space<vmem>>, %arg8: memref<6x512xf32, #tpu.memory_space<vmem>>, %arg9: memref<16x128xf32, #tpu.memory_space<vmem>>) attributes {dimension_semantics = [#tpu.dimension_semantics<parallel>], iteration_bounds = array<i64: 1>, scalar_prefetch = 0 : i64, scratch_operands = 0 : i64, tpu.core_type = #tpu.core_type<tc>, window_params = [{transform_indices = @transform_0, window_bounds = array<i64: 16, 32>}, {pipeline_mode = #tpu.pipeline_mode<synchronous>, transform_indices = @transform_1, window_bounds = array<i64: 32, 512>}, {pipeline_mode = #tpu.pipeline_mode<synchronous>, transform_indices = @transform_2, window_bounds = array<i64: 512, 256>}, {pipeline_mode = #tpu.pipeline_mode<synchronous>, transform_indices = @transform_3, window_bounds = array<i64: 256, 128>}, {pipeline_mode = #tpu.pipeline_mode<synchronous>, transform_indices = @transform_4, window_bounds = array<i64: 128, 128>}, {pipeline_mode = #tpu.pipeline_mode<synchronous>, transform_indices = @transform_5, window_bounds = array<i64: 128, 128>}, {pipeline_mode = #tpu.pipeline_mode<synchronous>, transform_indices = @transform_6, window_bounds = array<i64: 128, 128>}, {pipeline_mode = #tpu.pipeline_mode<synchronous>, transform_indices = @transform_7, window_bounds = array<i64: 6, 512>}, {transform_indices = @transform_8, window_bounds = array<i64: 16, 128>}]} {
    %c0 = arith.constant 0 : index
    %c0_0 = arith.constant 0 : index
    %0 = vector.load %arg1[%c0, %c0_0] : memref<16x32xf32, #tpu.memory_space<vmem>>, vector<16x32xf32>
    %1 = arith.truncf %0 : vector<16x32xf32> to vector<16x32xbf16>
    %c0_1 = arith.constant 0 : index
    %c0_2 = arith.constant 0 : index
    %2 = vector.load %arg2[%c0_1, %c0_2] : memref<32x512xbf16, #tpu.memory_space<vmem>>, vector<32x512xbf16>
    %cst = arith.constant dense<0.000000e+00> : vector<16x512xf32>
    %3 = tpu.matmul %1, %2, %cst {dimension_numbers = #tpu.dot_dimension_numbers<[1], [0], [0], [1], [0, 0, 1, 1], [], []>} : vector<16x32xbf16>, vector<32x512xbf16>, vector<16x512xf32> -> vector<16x512xf32>
    %c0_3 = arith.constant 0 : index
    %c0_4 = arith.constant 0 : index
    %4 = vector.load %arg8[%c0_3, %c0_4] : memref<6x512xf32, #tpu.memory_space<vmem>>, vector<1x512xf32>
    %5 = vector.broadcast %4 : vector<1x512xf32> to vector<16x512xf32>
    %6 = arith.addf %3, %5 : vector<16x512xf32>
    %cst_5 = arith.constant 0.000000e+00 : f32
    %7 = vector.broadcast %cst_5 : f32 to vector<16x512xf32>
    %8 = arith.maximumf %6, %7 : vector<16x512xf32>
    %9 = arith.truncf %8 : vector<16x512xf32> to vector<16x512xbf16>
    %c0_6 = arith.constant 0 : index
    %c0_7 = arith.constant 0 : index
    %10 = vector.load %arg3[%c0_6, %c0_7] : memref<512x256xbf16, #tpu.memory_space<vmem>>, vector<512x256xbf16>
    %cst_8 = arith.constant dense<0.000000e+00> : vector<16x256xf32>
    %11 = tpu.matmul %9, %10, %cst_8 {dimension_numbers = #tpu.dot_dimension_numbers<[1], [0], [0], [1], [0, 0, 1, 1], [], []>} : vector<16x512xbf16>, vector<512x256xbf16>, vector<16x256xf32> -> vector<16x256xf32>
    %c1 = arith.constant 1 : index
    %c0_9 = arith.constant 0 : index
    %12 = vector.load %arg8[%c1, %c0_9] : memref<6x512xf32, #tpu.memory_space<vmem>>, vector<1x256xf32>
    %13 = vector.broadcast %12 : vector<1x256xf32> to vector<16x256xf32>
    %14 = arith.addf %11, %13 : vector<16x256xf32>
    %cst_10 = arith.constant 0.000000e+00 : f32
    %15 = vector.broadcast %cst_10 : f32 to vector<16x256xf32>
    %16 = arith.maximumf %14, %15 : vector<16x256xf32>
    %17 = arith.truncf %16 : vector<16x256xf32> to vector<16x256xbf16>
    %c0_11 = arith.constant 0 : index
    %c0_12 = arith.constant 0 : index
    %18 = vector.load %arg4[%c0_11, %c0_12] : memref<256x128xbf16, #tpu.memory_space<vmem>>, vector<256x128xbf16>
    %cst_13 = arith.constant dense<0.000000e+00> : vector<16x128xf32>
    %19 = tpu.matmul %17, %18, %cst_13 {dimension_numbers = #tpu.dot_dimension_numbers<[1], [0], [0], [1], [0, 0, 1, 1], [], []>} : vector<16x256xbf16>, vector<256x128xbf16>, vector<16x128xf32> -> vector<16x128xf32>
    %c2 = arith.constant 2 : index
    %c0_14 = arith.constant 0 : index
    %20 = vector.load %arg8[%c2, %c0_14] : memref<6x512xf32, #tpu.memory_space<vmem>>, vector<1x128xf32>
    %21 = vector.broadcast %20 : vector<1x128xf32> to vector<16x128xf32>
    %22 = arith.addf %19, %21 : vector<16x128xf32>
    %cst_15 = arith.constant 0.000000e+00 : f32
    %23 = vector.broadcast %cst_15 : f32 to vector<16x128xf32>
    %24 = arith.maximumf %22, %23 : vector<16x128xf32>
    %25 = arith.truncf %24 : vector<16x128xf32> to vector<16x128xbf16>
    %c0_16 = arith.constant 0 : index
    %c0_17 = arith.constant 0 : index
    %26 = vector.load %arg5[%c0_16, %c0_17] : memref<128x128xbf16, #tpu.memory_space<vmem>>, vector<128x128xbf16>
    %cst_18 = arith.constant dense<0.000000e+00> : vector<16x128xf32>
    %27 = tpu.matmul %25, %26, %cst_18 {dimension_numbers = #tpu.dot_dimension_numbers<[1], [0], [0], [1], [0, 0, 1, 1], [], []>} : vector<16x128xbf16>, vector<128x128xbf16>, vector<16x128xf32> -> vector<16x128xf32>
    %c3 = arith.constant 3 : index
    %c0_19 = arith.constant 0 : index
    %28 = vector.load %arg8[%c3, %c0_19] : memref<6x512xf32, #tpu.memory_space<vmem>>, vector<1x128xf32>
    %29 = vector.broadcast %28 : vector<1x128xf32> to vector<16x128xf32>
    %30 = arith.addf %27, %29 : vector<16x128xf32>
    %cst_20 = arith.constant 0.000000e+00 : f32
    %31 = vector.broadcast %cst_20 : f32 to vector<16x128xf32>
    %32 = arith.maximumf %30, %31 : vector<16x128xf32>
    %33 = arith.truncf %32 : vector<16x128xf32> to vector<16x128xbf16>
    %c0_21 = arith.constant 0 : index
    %c0_22 = arith.constant 0 : index
    %34 = vector.load %arg6[%c0_21, %c0_22] : memref<128x128xbf16, #tpu.memory_space<vmem>>, vector<128x128xbf16>
    %cst_23 = arith.constant dense<0.000000e+00> : vector<16x128xf32>
    %35 = tpu.matmul %33, %34, %cst_23 {dimension_numbers = #tpu.dot_dimension_numbers<[1], [0], [0], [1], [0, 0, 1, 1], [], []>} : vector<16x128xbf16>, vector<128x128xbf16>, vector<16x128xf32> -> vector<16x128xf32>
    %c4 = arith.constant 4 : index
    %c0_24 = arith.constant 0 : index
    %36 = vector.load %arg8[%c4, %c0_24] : memref<6x512xf32, #tpu.memory_space<vmem>>, vector<1x128xf32>
    %37 = vector.broadcast %36 : vector<1x128xf32> to vector<16x128xf32>
    %38 = arith.addf %35, %37 : vector<16x128xf32>
    %cst_25 = arith.constant 0.000000e+00 : f32
    %39 = vector.broadcast %cst_25 : f32 to vector<16x128xf32>
    %40 = arith.maximumf %38, %39 : vector<16x128xf32>
    %41 = arith.truncf %40 : vector<16x128xf32> to vector<16x128xbf16>
    %c0_26 = arith.constant 0 : index
    %c0_27 = arith.constant 0 : index
    %42 = vector.load %arg7[%c0_26, %c0_27] : memref<128x128xbf16, #tpu.memory_space<vmem>>, vector<128x128xbf16>
    %cst_28 = arith.constant dense<0.000000e+00> : vector<16x128xf32>
    %43 = tpu.matmul %41, %42, %cst_28 {dimension_numbers = #tpu.dot_dimension_numbers<[1], [0], [0], [1], [0, 0, 1, 1], [], []>} : vector<16x128xbf16>, vector<128x128xbf16>, vector<16x128xf32> -> vector<16x128xf32>
    %c5 = arith.constant 5 : index
    %c0_29 = arith.constant 0 : index
    %44 = vector.load %arg8[%c5, %c0_29] : memref<6x512xf32, #tpu.memory_space<vmem>>, vector<1x128xf32>
    %45 = vector.broadcast %44 : vector<1x128xf32> to vector<16x128xf32>
    %46 = arith.addf %43, %45 : vector<16x128xf32>
    %cst_30 = arith.constant 0.000000e+00 : f32
    %47 = vector.broadcast %cst_30 : f32 to vector<16x128xf32>
    %48 = arith.maximumf %46, %47 : vector<16x128xf32>
    %c0_31 = arith.constant 0 : index
    %c0_32 = arith.constant 0 : index
    %49 = vector.load %arg9[%c0_31, %c0_32] : memref<16x128xf32, #tpu.memory_space<vmem>>, vector<16x128xf32>
    tpu.vector_store %arg9[%c0_31, %c0_32], %48 {strides = array<i32>} : memref<16x128xf32, #tpu.memory_space<vmem>>, vector<16x128xf32>,
    return
  }
  func.func @transform_0(%arg0: i32) -> (i32, i32) {
    %c0_i32 = arith.constant 0 : i32
    %c0_i32_0 = arith.constant 0 : i32
    return %arg0, %c0_i32 : i32, i32
  }
  func.func @transform_1(%arg0: i32) -> (i32, i32) {
    %c0_i32 = arith.constant 0 : i32
    %c0_i32_0 = arith.constant 0 : i32
    %c0_i32_1 = arith.constant 0 : i32
    return %c0_i32, %c0_i32_0 : i32, i32
  }
  func.func @transform_2(%arg0: i32) -> (i32, i32) {
    %c0_i32 = arith.constant 0 : i32
    %c0_i32_0 = arith.constant 0 : i32
    %c0_i32_1 = arith.constant 0 : i32
    return %c0_i32, %c0_i32_0 : i32, i32
  }
  func.func @transform_3(%arg0: i32) -> (i32, i32) {
    %c0_i32 = arith.constant 0 : i32
    %c0_i32_0 = arith.constant 0 : i32
    %c0_i32_1 = arith.constant 0 : i32
    return %c0_i32, %c0_i32_0 : i32, i32
  }
  func.func @transform_4(%arg0: i32) -> (i32, i32) {
    %c0_i32 = arith.constant 0 : i32
    %c0_i32_0 = arith.constant 0 : i32
    %c0_i32_1 = arith.constant 0 : i32
    return %c0_i32, %c0_i32_0 : i32, i32
  }
  func.func @transform_5(%arg0: i32) -> (i32, i32) {
    %c0_i32 = arith.constant 0 : i32
    %c0_i32_0 = arith.constant 0 : i32
    %c0_i32_1 = arith.constant 0 : i32
    return %c0_i32, %c0_i32_0 : i32, i32
  }
  func.func @transform_6(%arg0: i32) -> (i32, i32) {
    %c0_i32 = arith.constant 0 : i32
    %c0_i32_0 = arith.constant 0 : i32
    %c0_i32_1 = arith.constant 0 : i32
    return %c0_i32, %c0_i32_0 : i32, i32
  }
  func.func @transform_7(%arg0: i32) -> (i32, i32) {
    %c0_i32 = arith.constant 0 : i32
    %c0_i32_0 = arith.constant 0 : i32
    %c0_i32_1 = arith.constant 0 : i32
    return %c0_i32, %c0_i32_0 : i32, i32
  }
  func.func @transform_8(%arg0: i32) -> (i32, i32) {
    %c0_i32 = arith.constant 0 : i32
    %c0_i32_0 = arith.constant 0 : i32
    return %arg0, %c0_i32 : i32, i32
  }
}

</mosaic_0001>

<llo_original>
// kernel: ann_blocks_forward.1
$region0: #{ann_blocks_forward.1}
  #allocation0 [shape = 'u32[]', space=smem, size = 0x4, offset = 0x4, fixed_abs, tag = 'smem constant byte address 0x4 - core index']
  #allocation1 [shape = 'u32[144,128]{1,0:T(1,128)}', space=vmem, size = 0x12000, scoped, tag = 'internal scratch']
  %s0 = inlined_call_operand.vmem [shape: f32[16,32], index: 0, kind: input, shape index: {}]
  %s1 = inlined_call_operand.hbm [shape: bf16[32,512], index: 1, kind: input, shape index: {}]
  %s2 = inlined_call_operand.hbm [shape: bf16[512,256], index: 2, kind: input, shape index: {}]
  %s3 = inlined_call_operand.hbm [shape: bf16[256,128], index: 3, kind: input, shape index: {}]
  %s4 = inlined_call_operand.hbm [shape: bf16[128,128], index: 4, kind: input, shape index: {}]
  %s5 = inlined_call_operand.hbm [shape: bf16[128,128], index: 5, kind: input, shape index: {}]
  %s6 = inlined_call_operand.hbm [shape: bf16[128,128], index: 6, kind: input, shape index: {}]
  %s7 = inlined_call_operand.vmem [shape: f32[6,512], index: 7, kind: input, shape index: {}]
  %s8 = inlined_call_operand.vmem [shape: f32[16,128], index: 8, kind: output, shape index: {}]
  %s9 = sld [smem:[#allocation0]]
  $region66: #{ann_blocks_forward.1} parent=0
    _
  %s11 = ssub.s32 1, %s9
  %s12 = scalar_select 0, %s11, %s9
  $region1: #{ann_blocks_forward.1} parent=0
    #allocation2 [shape = 'u8[32768]{0}', space=vmem, size = 0x8000, scoped, tag = 'input window, operand 1, single buffered']
    #allocation3 [shape = 's32[1]{0}', space=sflag, size = 0x4, scoped, tag = 'scoped memory for ann_blocks_forward.1']
    #allocation4 [shape = 'u8[262144]{0}', space=vmem, size = 0x40000, scoped, tag = 'input window, operand 2, single buffered']
    #allocation5 [shape = 's32[1]{0}', space=sflag, size = 0x4, scoped, tag = 'scoped memory for ann_blocks_forward.1']
    #allocation6 [shape = 'u8[65536]{0}', space=vmem, size = 0x10000, scoped, tag = 'input window, operand 3, single buffered']
    #allocation7 [shape = 'u8[32768]{0}', space=vmem, size = 0x8000, scoped, tag = 'input window, operand 4, single buffered']
    #allocation8 [shape = 's32[1]{0}', space=sflag, size = 0x4, scoped, tag = 'scoped memory for ann_blocks_forward.1']
    #allocation9 [shape = 'u8[32768]{0}', space=vmem, size = 0x8000, scoped, tag = 'input window, operand 5, single buffered']
    #allocation10 [shape = 'u8[32768]{0}', space=vmem, size = 0x8000, scoped, tag = 'input window, operand 6, single buffered']
    #allocation11 [shape = 's32[1]{0}', space=sflag, size = 0x4, scoped, tag = 'scoped memory for ann_blocks_forward.1']
    %13 = vsyncpa [#allocation3], 0
    %14 = vsyncpa [#allocation5], 0
    %15 = vsyncpa [#allocation8], 0
    %16 = vsyncpa [#allocation11], 0
    // Predicated region
    $region2: #{ann_blocks_forward.1} parent=1 // pred_check
      _
    $region3: #{ann_blocks_forward.1} parent=1 // pred_check_branch
      %18 = sbr.rel (0) target = $region5
    $region4: #{ann_blocks_forward.1} parent=1 // pred_region
      _
    $region5: #{ann_blocks_forward.1} parent=1 // pred_fallthru
      _
    // Predicated region
    $region6: #{ann_blocks_forward.1} parent=1 // pred_check
      _
    $region7: #{ann_blocks_forward.1} parent=1 // pred_check_branch
      %20 = sbr.rel (0) target = $region9
    $region8: #{ann_blocks_forward.1} parent=1 // pred_region
      %s22 = ssub.s32 1024, 1024
      %23 = vsyncadd [#allocation3], %s22
      %s24 = sshll.u32 [#allocation2], 4
      %s25 = int_to_ptr.vmem [resolvable:$true] %s24
      %30 = dma.hbm_to_vmem [thread:$0]  %s1, 1024, %s25, [#allocation3], 256, 256, 16
    $region9: #{ann_blocks_forward.1} parent=1 // pred_fallthru
      _
    // Predicated region
    $region10: #{ann_blocks_forward.1} parent=1 // pred_check
      _
    $region11: #{ann_blocks_forward.1} parent=1 // pred_check_branch
      %32 = sbr.rel (0) target = $region13
    $region12: #{ann_blocks_forward.1} parent=1 // pred_region
      %s34 = ssub.s32 8192, 8192
      %35 = vsyncadd [#allocation5], %s34
      %s36 = sshll.u32 [#allocation4], 4
      %s37 = int_to_ptr.vmem [resolvable:$true] %s36
      %42 = dma.hbm_to_vmem [thread:$0]  %s2, 8192, %s37, [#allocation5], 128, 128, 8
    $region13: #{ann_blocks_forward.1} parent=1 // pred_fallthru
      _
    // Predicated region
    $region14: #{ann_blocks_forward.1} parent=1 // pred_check
      _
    $region15: #{ann_blocks_forward.1} parent=1 // pred_check_branch
      %44 = sbr.rel (0) target = $region17
    $region16: #{ann_blocks_forward.1} parent=1 // pred_region
      %s46 = ssub.s32 2048, 2048
      %47 = vsyncadd [#allocation5], %s46
      %s48 = sshll.u32 [#allocation6], 4
      %s49 = int_to_ptr.vmem [resolvable:$true] %s48
      %54 = dma.hbm_to_vmem [thread:$0]  %s3, 2048, %s49, [#allocation5], 64, 64, 4
    $region17: #{ann_blocks_forward.1} parent=1 // pred_fallthru
      _
    // Predicated region
    $region18: #{ann_blocks_forward.1} parent=1 // pred_check
      _
    $region19: #{ann_blocks_forward.1} parent=1 // pred_check_branch
      %56 = sbr.rel (0) target = $region21
    $region20: #{ann_blocks_forward.1} parent=1 // pred_region
      %s58 = ssub.s32 1024, 1024
      %59 = vsyncadd [#allocation8], %s58
      %s60 = sshll.u32 [#allocation7], 4
      %s61 = int_to_ptr.vmem [resolvable:$true] %s60
      %66 = dma.hbm_to_vmem [thread:$0]  %s4, 1024, %s61, [#allocation8], 64, 64, 4
    $region21: #{ann_blocks_forward.1} parent=1 // pred_fallthru
      _
    // Predicated region
    $region22: #{ann_blocks_forward.1} parent=1 // pred_check
      _
    $region23: #{ann_blocks_forward.1} parent=1 // pred_check_branch
      %68 = sbr.rel (0) target = $region25
    $region24: #{ann_blocks_forward.1} parent=1 // pred_region
      %s70 = ssub.s32 1024, 1024
      %71 = vsyncadd [#allocation8], %s70
      %s72 = sshll.u32 [#allocation9], 4
      %s73 = int_to_ptr.vmem [resolvable:$true] %s72
      %78 = dma.hbm_to_vmem [thread:$0]  %s5, 1024, %s73, [#allocation8], 64, 64, 4
    $region25: #{ann_blocks_forward.1} parent=1 // pred_fallthru
      _
    // Predicated region
    $region26: #{ann_blocks_forward.1} parent=1 // pred_check
      _
    $region27: #{ann_blocks_forward.1} parent=1 // pred_check_branch
      %80 = sbr.rel (0) target = $region29
    $region28: #{ann_blocks_forward.1} parent=1 // pred_region
      %s82 = ssub.s32 1024, 1024
      %83 = vsyncadd [#allocation11], %s82
      %s84 = sshll.u32 [#allocation10], 4
      %s85 = int_to_ptr.vmem [resolvable:$true] %s84
      %90 = dma.hbm_to_vmem [thread:$0]  %s6, 1024, %s85, [#allocation11], 64, 64, 4
    $region29: #{ann_blocks_forward.1} parent=1 // pred_fallthru
      _
    // Predicated region
    $region30: #{ann_blocks_forward.1} parent=1 // pred_check
      _
    $region31: #{ann_blocks_forward.1} parent=1 // pred_check_branch
      %92 = sbr.rel (0) target = $region33
    $region32: #{ann_blocks_forward.1} parent=1 // pred_region
      _
    $region33: #{ann_blocks_forward.1} parent=1 // pred_fallthru
      _
    // Predicated region
    $region34: #{ann_blocks_forward.1} parent=1 // pred_check
      _
    $region35: #{ann_blocks_forward.1} parent=1 // pred_check_branch
      %94 = sbr.rel (0) target = $region37
    $region36: #{ann_blocks_forward.1} parent=1 // pred_region
      %95 = dma.done [#allocation3], 1024
    $region37: #{ann_blocks_forward.1} parent=1 // pred_fallthru
      _
    // Predicated region
    $region38: #{ann_blocks_forward.1} parent=1 // pred_check
      _
    $region39: #{ann_blocks_forward.1} parent=1 // pred_check_branch
      %97 = sbr.rel (0) target = $region41
    $region40: #{ann_blocks_forward.1} parent=1 // pred_region
      %98 = dma.done [#allocation5], 8192
    $region41: #{ann_blocks_forward.1} parent=1 // pred_fallthru
      _
    // Predicated region
    $region42: #{ann_blocks_forward.1} parent=1 // pred_check
      _
    $region43: #{ann_blocks_forward.1} parent=1 // pred_check_branch
      %100 = sbr.rel (0) target = $region45
    $region44: #{ann_blocks_forward.1} parent=1 // pred_region
      %101 = dma.done [#allocation5], 2048
    $region45: #{ann_blocks_forward.1} parent=1 // pred_fallthru
      _
    // Predicated region
    $region46: #{ann_blocks_forward.1} parent=1 // pred_check
      _
    $region47: #{ann_blocks_forward.1} parent=1 // pred_check_branch
      %103 = sbr.rel (0) target = $region49
    $region48: #{ann_blocks_forward.1} parent=1 // pred_region
      %104 = dma.done [#allocation8], 1024
    $region49: #{ann_blocks_forward.1} parent=1 // pred_fallthru
      _
    // Predicated region
    $region50: #{ann_blocks_forward.1} parent=1 // pred_check
      _
    $region51: #{ann_blocks_forward.1} parent=1 // pred_check_branch
      %106 = sbr.rel (0) target = $region53
    $region52: #{ann_blocks_forward.1} parent=1 // pred_region
      %107 = dma.done [#allocation8], 1024
    $region53: #{ann_blocks_forward.1} parent=1 // pred_fallthru
      _
    // Predicated region
    $region54: #{ann_blocks_forward.1} parent=1 // pred_check
      _
    $region55: #{ann_blocks_forward.1} parent=1 // pred_check_branch
      %109 = sbr.rel (0) target = $region57
    $region56: #{ann_blocks_forward.1} parent=1 // pred_region
      %110 = dma.done [#allocation11], 1024
    $region57: #{ann_blocks_forward.1} parent=1 // pred_fallthru
      _
    %v112 = vld [vmem:[%s0] sm:$0xff]
    %v113 = vld [vmem:[%s0 + $0x8] sm:$0xff]
    %v114 = vpack.c.bf16 %v113, %v112
    %v115 = vld [vmem:[#allocation2] sm:$0xff]
    %v116 = vld [vmem:[#allocation2 + $0x8] sm:$0xff]
    %v117 = vld [vmem:[#allocation2 + $0x10] sm:$0xff]
    %v118 = vld [vmem:[#allocation2 + $0x18] sm:$0xff]
    %v119 = vld [vmem:[#allocation2 + $0x20] sm:$0xff]
    %v120 = vld [vmem:[#allocation2 + $0x28] sm:$0xff]
    %v121 = vld [vmem:[#allocation2 + $0x30] sm:$0xff]
    %v122 = vld [vmem:[#allocation2 + $0x38] sm:$0xff]
    %v123 = vld [vmem:[%s7] ss:$8 sm:$0xf]
    %v125 = vlaneseq
    %v126 = vshrl.u32 %v125, 7
    %v127 = vsub.s32 0, %v126
    %v128 = vrot.slane %v123, %v127
    %v129 = vlaneseq
    %v130 = vshrl.u32 %v129, 7
    %v131 = vsub.s32 1, %v130
    %v132 = vrot.slane %v123, %v131
    %v133 = vlaneseq
    %v134 = vshrl.u32 %v133, 7
    %v135 = vsub.s32 2, %v134
    %v136 = vrot.slane %v123, %v135
    %v137 = vlaneseq
    %v138 = vshrl.u32 %v137, 7
    %v139 = vsub.s32 3, %v138
    %v140 = vrot.slane %v123, %v139
    %v153 = vunpack.c.l.b16 %v115
    %v154 = vunpack.c.h.b16 %v115
    %v155 = vunpack.c.l.b16 %v116
    %v156 = vunpack.c.h.b16 %v116
    %v157 = vunpack.c.l.b16 %v117
    %v158 = vunpack.c.h.b16 %v117
    %v159 = vunpack.c.l.b16 %v118
    %v160 = vunpack.c.h.b16 %v118
    %v161 = vunpack.c.l.b16 %v119
    %v162 = vunpack.c.h.b16 %v119
    %v163 = vunpack.c.l.b16 %v120
    %v164 = vunpack.c.h.b16 %v120
    %v165 = vunpack.c.l.b16 %v121
    %v166 = vunpack.c.h.b16 %v121
    %v167 = vunpack.c.l.b16 %v122
    %v168 = vunpack.c.h.b16 %v122
    %v169 = vpack.c.b16 %v157, %v153
    %v170 = vpack.c.b16 %v158, %v154
    %v171 = vpack.c.b16 %v159, %v155
    %v172 = vpack.c.b16 %v160, %v156
    %v173 = vpack.c.b16 %v165, %v161
    %v174 = vpack.c.b16 %v166, %v162
    %v175 = vpack.c.b16 %v167, %v163
    %v176 = vpack.c.b16 %v168, %v164
    %vm185 = vcmask 261120
    %v187 = vsel %vm185, %v114, 0
    %189 = vmatprep.subr.bf16.mxu0 %v170
    %190 = vmatpush1.bf16.msra.mxu0 %v169
    %191 = vmatprep.subr.bf16.mxu0 %v174
    %192 = vmatpush1.bf16.msra.mxu0 %v173
    %193 = vmatprep.subr.bf16.mxu0 0
    %194 = vmatpush1.bf16.msra.mxu0 0
    %195 = vmatprep.subr.bf16.mxu0 0
    %196 = vmatpush1.bf16.msra.mxu0 0
    %197 = vmatprep.subr.bf16.mxu0 0
    %198 = vmatpush1.bf16.msra.mxu0 0
    %199 = vmatprep.subr.bf16.mxu0 0
    %200 = vmatpush1.bf16.msra.mxu0 0
    %201 = vmatprep.subr.bf16.mxu0 0
    %202 = vmatpush1.bf16.msra.mxu0 0
    %203 = vmatprep.subr.bf16.mxu0 0
    %204 = vmatpush1.bf16.msra.mxu0 0
    %205 = vmatprep.subr.bf16.mxu0 0
    %206 = vmatpush1.bf16.msra.mxu0 0
    %207 = vmatprep.subr.bf16.mxu0 0
    %208 = vmatpush1.bf16.msra.mxu0 0
    %209 = vmatprep.subr.bf16.mxu0 0
    %210 = vmatpush1.bf16.msra.mxu0 0
    %211 = vmatprep.subr.bf16.mxu0 0
    %212 = vmatpush1.bf16.msra.mxu0 0
    %213 = vmatprep.subr.bf16.mxu0 0
    %214 = vmatpush1.bf16.msra.mxu0 0
    %215 = vmatprep.subr.bf16.mxu0 0
    %216 = vmatpush1.bf16.msra.mxu0 0
    %217 = vmatprep.subr.bf16.mxu0 0
    %218 = vmatpush1.bf16.msra.mxu0 0
    %219 = vmatprep.subr.bf16.mxu0 0
    %220 = vmatpush1.bf16.msra.mxu0 0
    %221 = vmatprep.mubr.bf16.mxu0 0
    %222 = vmatmul.mubr.bf16.gmra.mrb[0].mxu0 %v187
    %v223 = vpop.f32.mrb[0].mxu0
    %v224 = vadd.f32 %v128, %v223
    %v225 = vpop.f32.mrb[0].mxu0
    %v226 = vadd.f32 %v132, %v225
    %v227 = vpop.f32.mrb[0].mxu0
    %v228 = vadd.f32 %v128, %v227
    %v229 = vpop.f32.mrb[0].mxu0
    %v230 = vadd.f32 %v132, %v229
    %231 = vdwg.mxu0
    %232 = vmatprep.subr.bf16.mxu0 %v172
    %233 = vmatpush1.bf16.msra.mxu0 %v171
    %234 = vmatprep.subr.bf16.mxu0 %v176
    %235 = vmatpush1.bf16.msra.mxu0 %v175
    %236 = vmatprep.subr.bf16.mxu0 0
    %237 = vmatpush1.bf16.msra.mxu0 0
    %238 = vmatprep.subr.bf16.mxu0 0
    %239 = vmatpush1.bf16.msra.mxu0 0
    %240 = vmatprep.subr.bf16.mxu0 0
    %241 = vmatpush1.bf16.msra.mxu0 0
    %242 = vmatprep.subr.bf16.mxu0 0
    %243 = vmatpush1.bf16.msra.mxu0 0
    %244 = vmatprep.subr.bf16.mxu0 0
    %245 = vmatpush1.bf16.msra.mxu0 0
    %246 = vmatprep.subr.bf16.mxu0 0
    %247 = vmatpush1.bf16.msra.mxu0 0
    %248 = vmatprep.subr.bf16.mxu0 0
    %249 = vmatpush1.bf16.msra.mxu0 0
    %250 = vmatprep.subr.bf16.mxu0 0
    %251 = vmatpush1.bf16.msra.mxu0 0
    %252 = vmatprep.subr.bf16.mxu0 0
    %253 = vmatpush1.bf16.msra.mxu0 0
    %254 = vmatprep.subr.bf16.mxu0 0
    %255 = vmatpush1.bf16.msra.mxu0 0
    %256 = vmatprep.subr.bf16.mxu0 0
    %257 = vmatpush1.bf16.msra.mxu0 0
    %258 = vmatprep.subr.bf16.mxu0 0
    %259 = vmatpush1.bf16.msra.mxu0 0
    %260 = vmatprep.subr.bf16.mxu0 0
    %261 = vmatpush1.bf16.msra.mxu0 0
    %262 = vmatprep.subr.bf16.mxu0 0
    %263 = vmatpush1.bf16.msra.mxu0 0
    %264 = vmatprep.mubr.bf16.mxu0 0
    %265 = vmatmul.mubr.bf16.gmra.mrb[0].mxu0 %v187
    %v266 = vpop.f32.mrb[0].mxu0
    %v267 = vadd.f32 %v136, %v266
    %v268 = vpop.f32.mrb[0].mxu0
    %v269 = vadd.f32 %v140, %v268
    %v270 = vpop.f32.mrb[0].mxu0
    %v271 = vadd.f32 %v136, %v270
    %v272 = vpop.f32.mrb[0].mxu0
    %v273 = vadd.f32 %v140, %v272
    %274 = vdwg.mxu0
    %v275 = vmax.f32 %v224, 0.0
    %v276 = vmax.f32 %v226, 0.0
    %v277 = vmax.f32 %v267, 0.0
    %v278 = vmax.f32 %v269, 0.0
    %v279 = vmax.f32 %v228, 0.0
    %v280 = vmax.f32 %v230, 0.0
    %v281 = vmax.f32 %v271, 0.0
    %v282 = vmax.f32 %v273, 0.0
    %v283 = vpack.c.bf16 %v279, %v275
    %v284 = vpack.c.bf16 %v280, %v276
    %v285 = vpack.c.bf16 %v281, %v277
    %v286 = vpack.c.bf16 %v282, %v278
    %v287 = vld [vmem:[#allocation4] sm:$0xff]
    %v288 = vld [vmem:[#allocation4 + $0x8] sm:$0xff]
    %v289 = vld [vmem:[#allocation4 + $0x10] sm:$0xff]
    %v290 = vld [vmem:[#allocation4 + $0x18] sm:$0xff]
    %v291 = vld [vmem:[#allocation4 + $0x20] sm:$0xff]
    %v292 = vld [vmem:[#allocation4 + $0x28] sm:$0xff]
    %v293 = vld [vmem:[#allocation4 + $0x30] sm:$0xff]
    %v294 = vld [vmem:[#allocation4 + $0x38] sm:$0xff]
    %v295 = vld [vmem:[#allocation4 + $0x40] sm:$0xff]
    %v296 = vld [vmem:[#allocation4 + $0x48] sm:$0xff]
    %v297 = vld [vmem:[#allocation4 + $0x50] sm:$0xff]
    %v298 = vld [vmem:[#allocation4 + $0x58] sm:$0xff]
    %v299 = vld [vmem:[#allocation4 + $0x60] sm:$0xff]
    %v300 = vld [vmem:[#allocation4 + $0x68] sm:$0xff]
    %v301 = vld [vmem:[#allocation4 + $0x70] sm:$0xff]
    %v302 = vld [vmem:[#allocation4 + $0x78] sm:$0xff]
    %v303 = vld [vmem:[#allocation4 + $0x80] sm:$0xff]
    %v304 = vld [vmem:[#allocation4 + $0x88] sm:$0xff]
    %v305 = vld [vmem:[#allocation4 + $0x90] sm:$0xff]
    %v306 = vld [vmem:[#allocation4 + $0x98] sm:$0xff]
    %v307 = vld [vmem:[#allocation4 + $0xa0] sm:$0xff]
    %v308 = vld [vmem:[#allocation4 + $0xa8] sm:$0xff]
    %v309 = vld [vmem:[#allocation4 + $0xb0] sm:$0xff]
    %v310 = vld [vmem:[#allocation4 + $0xb8] sm:$0xff]
    %v311 = vld [vmem:[#allocation4 + $0xc0] sm:$0xff]
    %v312 = vld [vmem:[#allocation4 + $0xc8] sm:$0xff]
    %v313 = vld [vmem:[#allocation4 + $0xd0] sm:$0xff]
    %v314 = vld [vmem:[#allocation4 + $0xd8] sm:$0xff]
    %v315 = vld [vmem:[#allocation4 + $0xe0] sm:$0xff]
    %v316 = vld [vmem:[#allocation4 + $0xe8] sm:$0xff]
    %v317 = vld [vmem:[#allocation4 + $0xf0] sm:$0xff]
    %v318 = vld [vmem:[#allocation4 + $0xf8] sm:$0xff]
    %v319 = vld [vmem:[#allocation4 + $0x100] sm:$0xff]
    %v320 = vld [vmem:[#allocation4 + $0x108] sm:$0xff]
    %v321 = vld [vmem:[#allocation4 + $0x110] sm:$0xff]
    %v322 = vld [vmem:[#allocation4 + $0x118] sm:$0xff]
    %v323 = vld [vmem:[#allocation4 + $0x120] sm:$0xff]
    %v324 = vld [vmem:[#allocation4 + $0x128] sm:$0xff]
    %v325 = vld [vmem:[#allocation4 + $0x130] sm:$0xff]
    %v326 = vld [vmem:[#allocation4 + $0x138] sm:$0xff]
    %v327 = vld [vmem:[#allocation4 + $0x140] sm:$0xff]
    %v328 = vld [vmem:[#allocation4 + $0x148] sm:$0xff]
    %v329 = vld [vmem:[#allocation4 + $0x150] sm:$0xff]
    %v330 = vld [vmem:[#allocation4 + $0x158] sm:$0xff]
    %v331 = vld [vmem:[#allocation4 + $0x160] sm:$0xff]
    %v332 = vld [vmem:[#allocation4 + $0x168] sm:$0xff]
    %v333 = vld [vmem:[#allocation4 + $0x170] sm:$0xff]
    %v334 = vld [vmem:[#allocation4 + $0x178] sm:$0xff]
    %v335 = vld [vmem:[#allocation4 + $0x180] sm:$0xff]
    %v336 = vld [vmem:[#allocation4 + $0x188] sm:$0xff]
    %v337 = vld [vmem:[#allocation4 + $0x190] sm:$0xff]
    %v338 = vld [vmem:[#allocation4 + $0x198] sm:$0xff]
    %v339 = vld [vmem:[#allocation4 + $0x1a0] sm:$0xff]
    %v340 = vld [vmem:[#allocation4 + $0x1a8] sm:$0xff]
    %v341 = vld [vmem:[#allocation4 + $0x1b0] sm:$0xff]
    %v342 = vld [vmem:[#allocation4 + $0x1b8] sm:$0xff]
    %v343 = vld [vmem:[#allocation4 + $0x1c0] sm:$0xff]
    %v344 = vld [vmem:[#allocation4 + $0x1c8] sm:$0xff]
    %v345 = vld [vmem:[#allocation4 + $0x1d0] sm:$0xff]
    %v346 = vld [vmem:[#allocation4 + $0x1d8] sm:$0xff]
    %v347 = vld [vmem:[#allocation4 + $0x1e0] sm:$0xff]
    %v348 = vld [vmem:[#allocation4 + $0x1e8] sm:$0xff]
    %v349 = vld [vmem:[#allocation4 + $0x1f0] sm:$0xff]
    %v350 = vld [vmem:[#allocation4 + $0x1f8] sm:$0xff]
    %s351 = scalar_lea.vmem %s7, 1
    %v352 = vld [vmem:[%s351] ss:$8 sm:$0x3]
    %v354 = vlaneseq
    %v355 = vshrl.u32 %v354, 7
    %v356 = vsub.s32 0, %v355
    %v357 = vrot.slane %v352, %v356
    %v358 = vlaneseq
    %v359 = vshrl.u32 %v358, 7
    %v360 = vsub.s32 1, %v359
    %v361 = vrot.slane %v352, %v360
    %v428 = vunpack.c.l.b16 %v287
    %v429 = vunpack.c.h.b16 %v287
    %v430 = vunpack.c.l.b16 %v288
    %v431 = vunpack.c.h.b16 %v288
    %v432 = vunpack.c.l.b16 %v289
    %v433 = vunpack.c.h.b16 %v289
    %v434 = vunpack.c.l.b16 %v290
    %v435 = vunpack.c.h.b16 %v290
    %v436 = vunpack.c.l.b16 %v291
    %v437 = vunpack.c.h.b16 %v291
    %v438 = vunpack.c.l.b16 %v292
    %v439 = vunpack.c.h.b16 %v292
    %v440 = vunpack.c.l.b16 %v293
    %v441 = vunpack.c.h.b16 %v293
    %v442 = vunpack.c.l.b16 %v294
    %v443 = vunpack.c.h.b16 %v294
    %v444 = vunpack.c.l.b16 %v295
    %v445 = vunpack.c.h.b16 %v295
    %v446 = vunpack.c.l.b16 %v296
    %v447 = vunpack.c.h.b16 %v296
    %v448 = vunpack.c.l.b16 %v297
    %v449 = vunpack.c.h.b16 %v297
    %v450 = vunpack.c.l.b16 %v298
    %v451 = vunpack.c.h.b16 %v298
    %v452 = vunpack.c.l.b16 %v299
    %v453 = vunpack.c.h.b16 %v299
    %v454 = vunpack.c.l.b16 %v300
    %v455 = vunpack.c.h.b16 %v300
    %v456 = vunpack.c.l.b16 %v301
    %v457 = vunpack.c.h.b16 %v301
    %v458 = vunpack.c.l.b16 %v302
    %v459 = vunpack.c.h.b16 %v302
    %v460 = vunpack.c.l.b16 %v303
    %v461 = vunpack.c.h.b16 %v303
    %v462 = vunpack.c.l.b16 %v304
    %v463 = vunpack.c.h.b16 %v304
    %v464 = vunpack.c.l.b16 %v305
    %v465 = vunpack.c.h.b16 %v305
    %v466 = vunpack.c.l.b16 %v306
    %v467 = vunpack.c.h.b16 %v306
    %v468 = vunpack.c.l.b16 %v307
    %v469 = vunpack.c.h.b16 %v307
    %v470 = vunpack.c.l.b16 %v308
    %v471 = vunpack.c.h.b16 %v308
    %v472 = vunpack.c.l.b16 %v309
    %v473 = vunpack.c.h.b16 %v309
    %v474 = vunpack.c.l.b16 %v310
    %v475 = vunpack.c.h.b16 %v310
    %v476 = vunpack.c.l.b16 %v311
    %v477 = vunpack.c.h.b16 %v311
    %v478 = vunpack.c.l.b16 %v312
    %v479 = vunpack.c.h.b16 %v312
    %v480 = vunpack.c.l.b16 %v313
    %v481 = vunpack.c.h.b16 %v313
    %v482 = vunpack.c.l.b16 %v314
    %v483 = vunpack.c.h.b16 %v314
    %v484 = vunpack.c.l.b16 %v315
    %v485 = vunpack.c.h.b16 %v315
    %v486 = vunpack.c.l.b16 %v316
    %v487 = vunpack.c.h.b16 %v316
    %v488 = vunpack.c.l.b16 %v317
    %v489 = vunpack.c.h.b16 %v317
    %v490 = vunpack.c.l.b16 %v318
    %v491 = vunpack.c.h.b16 %v318
    %v492 = vunpack.c.l.b16 %v319
    %v493 = vunpack.c.h.b16 %v319
    %v494 = vunpack.c.l.b16 %v320
    %v495 = vunpack.c.h.b16 %v320
    %v496 = vunpack.c.l.b16 %v321
    %v497 = vunpack.c.h.b16 %v321
    %v498 = vunpack.c.l.b16 %v322
    %v499 = vunpack.c.h.b16 %v322
    %v500 = vunpack.c.l.b16 %v323
    %v501 = vunpack.c.h.b16 %v323
    %v502 = vunpack.c.l.b16 %v324
    %v503 = vunpack.c.h.b16 %v324
    %v504 = vunpack.c.l.b16 %v325
    %v505 = vunpack.c.h.b16 %v325
    %v506 = vunpack.c.l.b16 %v326
    %v507 = vunpack.c.h.b16 %v326
    %v508 = vunpack.c.l.b16 %v327
    %v509 = vunpack.c.h.b16 %v327
    %v510 = vunpack.c.l.b16 %v328
    %v511 = vunpack.c.h.b16 %v328
    %v512 = vunpack.c.l.b16 %v329
    %v513 = vunpack.c.h.b16 %v329
    %v514 = vunpack.c.l.b16 %v330
    %v515 = vunpack.c.h.b16 %v330
    %v516 = vunpack.c.l.b16 %v331
    %v517 = vunpack.c.h.b16 %v331
    %v518 = vunpack.c.l.b16 %v332
    %v519 = vunpack.c.h.b16 %v332
    %v520 = vunpack.c.l.b16 %v333
    %v521 = vunpack.c.h.b16 %v333
    %v522 = vunpack.c.l.b16 %v334
    %v523 = vunpack.c.h.b16 %v334
    %v524 = vunpack.c.l.b16 %v335
    %v525 = vunpack.c.h.b16 %v335
    %v526 = vunpack.c.l.b16 %v336
    %v527 = vunpack.c.h.b16 %v336
    %v528 = vunpack.c.l.b16 %v337
    %v529 = vunpack.c.h.b16 %v337
    %v530 = vunpack.c.l.b16 %v338
    %v531 = vunpack.c.h.b16 %v338
    %v532 = vunpack.c.l.b16 %v339
    %v533 = vunpack.c.h.b16 %v339
    %v534 = vunpack.c.l.b16 %v340
    %v535 = vunpack.c.h.b16 %v340
    %v536 = vunpack.c.l.b16 %v341
    %v537 = vunpack.c.h.b16 %v341
    %v538 = vunpack.c.l.b16 %v342
    %v539 = vunpack.c.h.b16 %v342
    %v540 = vunpack.c.l.b16 %v343
    %v541 = vunpack.c.h.b16 %v343
    %v542 = vunpack.c.l.b16 %v344
    %v543 = vunpack.c.h.b16 %v344
    %v544 = vunpack.c.l.b16 %v345
    %v545 = vunpack.c.h.b16 %v345
    %v546 = vunpack.c.l.b16 %v346
    %v547 = vunpack.c.h.b16 %v346
    %v548 = vunpack.c.l.b16 %v347
    %v549 = vunpack.c.h.b16 %v347
    %v550 = vunpack.c.l.b16 %v348
    %v551 = vunpack.c.h.b16 %v348
    %v552 = vunpack.c.l.b16 %v349
    %v553 = vunpack.c.h.b16 %v349
    %v554 = vunpack.c.l.b16 %v350
    %v555 = vunpack.c.h.b16 %v350
    %v556 = vpack.c.b16 %v430, %v428
    %v557 = vpack.c.b16 %v431, %v429
    %v558 = vpack.c.b16 %v434, %v432
    %v559 = vpack.c.b16 %v435, %v433
    %v560 = vpack.c.b16 %v438, %v436
    %v561 = vpack.c.b16 %v439, %v437
    %v562 = vpack.c.b16 %v442, %v440
    %v563 = vpack.c.b16 %v443, %v441
    %v564 = vpack.c.b16 %v446, %v444
    %v565 = vpack.c.b16 %v447, %v445
    %v566 = vpack.c.b16 %v450, %v448
    %v567 = vpack.c.b16 %v451, %v449
    %v568 = vpack.c.b16 %v454, %v452
    %v569 = vpack.c.b16 %v455, %v453
    %v570 = vpack.c.b16 %v458, %v456
    %v571 = vpack.c.b16 %v459, %v457
    %v572 = vpack.c.b16 %v462, %v460
    %v573 = vpack.c.b16 %v463, %v461
    %v574 = vpack.c.b16 %v466, %v464
    %v575 = vpack.c.b16 %v467, %v465
    %v576 = vpack.c.b16 %v470, %v468
    %v577 = vpack.c.b16 %v471, %v469
    %v578 = vpack.c.b16 %v474, %v472
    %v579 = vpack.c.b16 %v475, %v473
    %v580 = vpack.c.b16 %v478, %v476
    %v581 = vpack.c.b16 %v479, %v477
    %v582 = vpack.c.b16 %v482, %v480
    %v583 = vpack.c.b16 %v483, %v481
    %v584 = vpack.c.b16 %v486, %v484
    %v585 = vpack.c.b16 %v487, %v485
    %v586 = vpack.c.b16 %v490, %v488
    %v587 = vpack.c.b16 %v491, %v489
    %v588 = vpack.c.b16 %v494, %v492
    %v589 = vpack.c.b16 %v495, %v493
    %v590 = vpack.c.b16 %v498, %v496
    %v591 = vpack.c.b16 %v499, %v497
    %v592 = vpack.c.b16 %v502, %v500
    %v593 = vpack.c.b16 %v503, %v501
    %v594 = vpack.c.b16 %v506, %v504
    %v595 = vpack.c.b16 %v507, %v505
    %v596 = vpack.c.b16 %v510, %v508
    %v597 = vpack.c.b16 %v511, %v509
    %v598 = vpack.c.b16 %v514, %v512
    %v599 = vpack.c.b16 %v515, %v513
    %v600 = vpack.c.b16 %v518, %v516
    %v601 = vpack.c.b16 %v519, %v517
    %v602 = vpack.c.b16 %v522, %v520
    %v603 = vpack.c.b16 %v523, %v521
    %v604 = vpack.c.b16 %v526, %v524
    %v605 = vpack.c.b16 %v527, %v525
    %v606 = vpack.c.b16 %v530, %v528
    %v607 = vpack.c.b16 %v531, %v529
    %v608 = vpack.c.b16 %v534, %v532
    %v609 = vpack.c.b16 %v535, %v533
    %v610 = vpack.c.b16 %v538, %v536
    %v611 = vpack.c.b16 %v539, %v537
    %v612 = vpack.c.b16 %v542, %v540
    %v613 = vpack.c.b16 %v543, %v541
    %v614 = vpack.c.b16 %v546, %v544
    %v615 = vpack.c.b16 %v547, %v545
    %v616 = vpack.c.b16 %v550, %v548
    %v617 = vpack.c.b16 %v551, %v549
    %v618 = vpack.c.b16 %v554, %v552
    %v619 = vpack.c.b16 %v555, %v553
    %684 = vmatprep.subr.bf16.mxu0 %v557
    %685 = vmatpush1.bf16.msra.mxu0 %v556
    %686 = vmatprep.subr.bf16.mxu0 %v559
    %687 = vmatpush1.bf16.msra.mxu0 %v558
    %688 = vmatprep.subr.bf16.mxu0 %v561
    %689 = vmatpush1.bf16.msra.mxu0 %v560
    %690 = vmatprep.subr.bf16.mxu0 %v563
    %691 = vmatpush1.bf16.msra.mxu0 %v562
    %692 = vmatprep.subr.bf16.mxu0 %v565
    %693 = vmatpush1.bf16.msra.mxu0 %v564
    %694 = vmatprep.subr.bf16.mxu0 %v567
    %695 = vmatpush1.bf16.msra.mxu0 %v566
    %696 = vmatprep.subr.bf16.mxu0 %v569
    %697 = vmatpush1.bf16.msra.mxu0 %v568
    %698 = vmatprep.subr.bf16.mxu0 %v571
    %699 = vmatpush1.bf16.msra.mxu0 %v570
    %700 = vmatprep.subr.bf16.mxu0 %v573
    %701 = vmatpush1.bf16.msra.mxu0 %v572
    %702 = vmatprep.subr.bf16.mxu0 %v575
    %703 = vmatpush1.bf16.msra.mxu0 %v574
    %704 = vmatprep.subr.bf16.mxu0 %v577
    %705 = vmatpush1.bf16.msra.mxu0 %v576
    %706 = vmatprep.subr.bf16.mxu0 %v579
    %707 = vmatpush1.bf16.msra.mxu0 %v578
    %708 = vmatprep.subr.bf16.mxu0 %v581
    %709 = vmatpush1.bf16.msra.mxu0 %v580
    %710 = vmatprep.subr.bf16.mxu0 %v583
    %711 = vmatpush1.bf16.msra.mxu0 %v582
    %712 = vmatprep.subr.bf16.mxu0 %v585
    %713 = vmatpush1.bf16.msra.mxu0 %v584
    %714 = vmatprep.subr.bf16.mxu0 %v587
    %715 = vmatpush1.bf16.msra.mxu0 %v586
    %716 = vmatprep.mubr.bf16.mxu0 %v284
    %717 = vmatmul.mubr.bf16.gmra.mrb[0].mxu0 %v283
    %v718 = vpop.f32.mrb[0].mxu0
    %v719 = vadd.f32 %v357, %v718
    %v720 = vpop.f32.mrb[0].mxu0
    %v721 = vadd.f32 %v361, %v720
    %v722 = vpop.f32.mrb[0].mxu0
    %v723 = vadd.f32 %v357, %v722
    %v724 = vpop.f32.mrb[0].mxu0
    %v725 = vadd.f32 %v361, %v724
    %726 = vdwg.mxu0
    %727 = vmatprep.subr.bf16.mxu0 %v589
    %728 = vmatpush1.bf16.msra.mxu0 %v588
    %729 = vmatprep.subr.bf16.mxu0 %v591
    %730 = vmatpush1.bf16.msra.mxu0 %v590
    %731 = vmatprep.subr.bf16.mxu0 %v593
    %732 = vmatpush1.bf16.msra.mxu0 %v592
    %733 = vmatprep.subr.bf16.mxu0 %v595
    %734 = vmatpush1.bf16.msra.mxu0 %v594
    %735 = vmatprep.subr.bf16.mxu0 %v597
    %736 = vmatpush1.bf16.msra.mxu0 %v596
    %737 = vmatprep.subr.bf16.mxu0 %v599
    %738 = vmatpush1.bf16.msra.mxu0 %v598
    %739 = vmatprep.subr.bf16.mxu0 %v601
    %740 = vmatpush1.bf16.msra.mxu0 %v600
    %741 = vmatprep.subr.bf16.mxu0 %v603
    %742 = vmatpush1.bf16.msra.mxu0 %v602
    %743 = vmatprep.subr.bf16.mxu0 %v605
    %744 = vmatpush1.bf16.msra.mxu0 %v604
    %745 = vmatprep.subr.bf16.mxu0 %v607
    %746 = vmatpush1.bf16.msra.mxu0 %v606
    %747 = vmatprep.subr.bf16.mxu0 %v609
    %748 = vmatpush1.bf16.msra.mxu0 %v608
    %749 = vmatprep.subr.bf16.mxu0 %v611
    %750 = vmatpush1.bf16.msra.mxu0 %v610
    %751 = vmatprep.subr.bf16.mxu0 %v613
    %752 = vmatpush1.bf16.msra.mxu0 %v612
    %753 = vmatprep.subr.bf16.mxu0 %v615
    %754 = vmatpush1.bf16.msra.mxu0 %v614
    %755 = vmatprep.subr.bf16.mxu0 %v617
    %756 = vmatpush1.bf16.msra.mxu0 %v616
    %757 = vmatprep.subr.bf16.mxu0 %v619
    %758 = vmatpush1.bf16.msra.mxu0 %v618
    %759 = vmatprep.mubr.bf16.mxu0 %v286
    %760 = vmatmul.mubr.bf16.gmra.mrb[0].mxu0 %v285
    %v761 = vpop.f32.mrb[0].mxu0
    %v762 = vadd.f32 %v719, %v761
    %v763 = vpop.f32.mrb[0].mxu0
    %v764 = vadd.f32 %v721, %v763
    %v765 = vpop.f32.mrb[0].mxu0
    %v766 = vadd.f32 %v723, %v765
    %v767 = vpop.f32.mrb[0].mxu0
    %v768 = vadd.f32 %v725, %v767
    %769 = vdwg.mxu0
    %v770 = vmax.f32 %v762, 0.0
    %v771 = vmax.f32 %v764, 0.0
    %v772 = vmax.f32 %v766, 0.0
    %v773 = vmax.f32 %v768, 0.0
    %v774 = vpack.c.bf16 %v772, %v770
    %v775 = vpack.c.bf16 %v773, %v771
    %v776 = vld [vmem:[#allocation6] sm:$0xf]
    %v777 = vld [vmem:[#allocation6 + $0x4] sm:$0xf]
    %v778 = vld [vmem:[#allocation6 + $0x8] sm:$0xf]
    %v779 = vld [vmem:[#allocation6 + $0xc] sm:$0xf]
    %v780 = vld [vmem:[#allocation6 + $0x10] sm:$0xf]
    %v781 = vld [vmem:[#allocation6 + $0x14] sm:$0xf]
    %v782 = vld [vmem:[#allocation6 + $0x18] sm:$0xf]
    %v783 = vld [vmem:[#allocation6 + $0x1c] sm:$0xf]
    %v784 = vld [vmem:[#allocation6 + $0x20] sm:$0xf]
    %v785 = vld [vmem:[#allocation6 + $0x24] sm:$0xf]
    %v786 = vld [vmem:[#allocation6 + $0x28] sm:$0xf]
    %v787 = vld [vmem:[#allocation6 + $0x2c] sm:$0xf]
    %v788 = vld [vmem:[#allocation6 + $0x30] sm:$0xf]
    %v789 = vld [vmem:[#allocation6 + $0x34] sm:$0xf]
    %v790 = vld [vmem:[#allocation6 + $0x38] sm:$0xf]
    %v791 = vld [vmem:[#allocation6 + $0x3c] sm:$0xf]
    %v792 = vld [vmem:[#allocation6 + $0x40] sm:$0xf]
    %v793 = vld [vmem:[#allocation6 + $0x44] sm:$0xf]
    %v794 = vld [vmem:[#allocation6 + $0x48] sm:$0xf]
    %v795 = vld [vmem:[#allocation6 + $0x4c] sm:$0xf]
    %v796 = vld [vmem:[#allocation6 + $0x50] sm:$0xf]
    %v797 = vld [vmem:[#allocation6 + $0x54] sm:$0xf]
    %v798 = vld [vmem:[#allocation6 + $0x58] sm:$0xf]
    %v799 = vld [vmem:[#allocation6 + $0x5c] sm:$0xf]
    %v800 = vld [vmem:[#allocation6 + $0x60] sm:$0xf]
    %v801 = vld [vmem:[#allocation6 + $0x64] sm:$0xf]
    %v802 = vld [vmem:[#allocation6 + $0x68] sm:$0xf]
    %v803 = vld [vmem:[#allocation6 + $0x6c] sm:$0xf]
    %v804 = vld [vmem:[#allocation6 + $0x70] sm:$0xf]
    %v805 = vld [vmem:[#allocation6 + $0x74] sm:$0xf]
    %v806 = vld [vmem:[#allocation6 + $0x78] sm:$0xf]
    %v807 = vld [vmem:[#allocation6 + $0x7c] sm:$0xf]
    %v808 = vld [vmem:[%s7 + $0x2] ss:$0 sm:$0xff]
    %v841 = vunpack.c.l.b16 %v776
    %v842 = vunpack.c.l.b16 %v777
    %v843 = vunpack.c.l.b16 %v778
    %v844 = vunpack.c.l.b16 %v779
    %v845 = vunpack.c.l.b16 %v780
    %v846 = vunpack.c.l.b16 %v781
    %v847 = vunpack.c.l.b16 %v782
    %v848 = vunpack.c.l.b16 %v783
    %v849 = vunpack.c.l.b16 %v784
    %v850 = vunpack.c.l.b16 %v785
    %v851 = vunpack.c.l.b16 %v786
    %v852 = vunpack.c.l.b16 %v787
    %v853 = vunpack.c.l.b16 %v788
    %v854 = vunpack.c.l.b16 %v789
    %v855 = vunpack.c.l.b16 %v790
    %v856 = vunpack.c.l.b16 %v791
    %v857 = vunpack.c.l.b16 %v792
    %v858 = vunpack.c.l.b16 %v793
    %v859 = vunpack.c.l.b16 %v794
    %v860 = vunpack.c.l.b16 %v795
    %v861 = vunpack.c.l.b16 %v796
    %v862 = vunpack.c.l.b16 %v797
    %v863 = vunpack.c.l.b16 %v798
    %v864 = vunpack.c.l.b16 %v799
    %v865 = vunpack.c.l.b16 %v800
    %v866 = vunpack.c.l.b16 %v801
    %v867 = vunpack.c.l.b16 %v802
    %v868 = vunpack.c.l.b16 %v803
    %v869 = vunpack.c.l.b16 %v804
    %v870 = vunpack.c.l.b16 %v805
    %v871 = vunpack.c.l.b16 %v806
    %v872 = vunpack.c.l.b16 %v807
    %v873 = vpack.c.b16 %v842, %v841
    %v874 = vpack.c.b16 %v844, %v843
    %v875 = vpack.c.b16 %v846, %v845
    %v876 = vpack.c.b16 %v848, %v847
    %v877 = vpack.c.b16 %v850, %v849
    %v878 = vpack.c.b16 %v852, %v851
    %v879 = vpack.c.b16 %v854, %v853
    %v880 = vpack.c.b16 %v856, %v855
    %v881 = vpack.c.b16 %v858, %v857
    %v882 = vpack.c.b16 %v860, %v859
    %v883 = vpack.c.b16 %v862, %v861
    %v884 = vpack.c.b16 %v864, %v863
    %v885 = vpack.c.b16 %v866, %v865
    %v886 = vpack.c.b16 %v868, %v867
    %v887 = vpack.c.b16 %v870, %v869
    %v888 = vpack.c.b16 %v872, %v871
    %905 = vmatprep.subr.bf16.mxu0 0
    %906 = vmatpush1.bf16.msra.mxu0 %v873
    %907 = vmatprep.subr.bf16.mxu0 0
    %908 = vmatpush1.bf16.msra.mxu0 %v874
    %909 = vmatprep.subr.bf16.mxu0 0
    %910 = vmatpush1.bf16.msra.mxu0 %v875
    %911 = vmatprep.subr.bf16.mxu0 0
    %912 = vmatpush1.bf16.msra.mxu0 %v876
    %913 = vmatprep.subr.bf16.mxu0 0
    %914 = vmatpush1.bf16.msra.mxu0 %v877
    %915 = vmatprep.subr.bf16.mxu0 0
    %916 = vmatpush1.bf16.msra.mxu0 %v878
    %917 = vmatprep.subr.bf16.mxu0 0
    %918 = vmatpush1.bf16.msra.mxu0 %v879
    %919 = vmatprep.subr.bf16.mxu0 0
    %920 = vmatpush1.bf16.msra.mxu0 %v880
    %921 = vmatprep.subr.bf16.mxu0 0
    %922 = vmatpush1.bf16.msra.mxu0 %v881
    %923 = vmatprep.subr.bf16.mxu0 0
    %924 = vmatpush1.bf16.msra.mxu0 %v882
    %925 = vmatprep.subr.bf16.mxu0 0
    %926 = vmatpush1.bf16.msra.mxu0 %v883
    %927 = vmatprep.subr.bf16.mxu0 0
    %928 = vmatpush1.bf16.msra.mxu0 %v884
    %929 = vmatprep.subr.bf16.mxu0 0
    %930 = vmatpush1.bf16.msra.mxu0 %v885
    %931 = vmatprep.subr.bf16.mxu0 0
    %932 = vmatpush1.bf16.msra.mxu0 %v886
    %933 = vmatprep.subr.bf16.mxu0 0
    %934 = vmatpush1.bf16.msra.mxu0 %v887
    %935 = vmatprep.subr.bf16.mxu0 0
    %936 = vmatpush1.bf16.msra.mxu0 %v888
    %937 = vmatprep.mubr.bf16.mxu0 %v775
    %938 = vmatmul.mubr.bf16.gmra.mrb[0].mxu0 %v774
    %v939 = vpop.f32.mrb[0].mxu0
    %v940 = vadd.f32 %v808, %v939
    %v941 = vpop.f32.mrb[0].mxu0
    %v942 = vpop.f32.mrb[0].mxu0
    %v943 = vadd.f32 %v808, %v942
    %v944 = vpop.f32.mrb[0].mxu0
    %945 = vdwg.mxu0
    %v946 = vmax.f32 %v940, 0.0
    %v947 = vmax.f32 %v943, 0.0
    %v948 = vpack.c.bf16 %v947, %v946
    %v949 = vld [vmem:[#allocation7] sm:$0xf]
    %v950 = vld [vmem:[#allocation7 + $0x4] sm:$0xf]
    %v951 = vld [vmem:[#allocation7 + $0x8] sm:$0xf]
    %v952 = vld [vmem:[#allocation7 + $0xc] sm:$0xf]
    %v953 = vld [vmem:[#allocation7 + $0x10] sm:$0xf]
    %v954 = vld [vmem:[#allocation7 + $0x14] sm:$0xf]
    %v955 = vld [vmem:[#allocation7 + $0x18] sm:$0xf]
    %v956 = vld [vmem:[#allocation7 + $0x1c] sm:$0xf]
    %v957 = vld [vmem:[#allocation7 + $0x20] sm:$0xf]
    %v958 = vld [vmem:[#allocation7 + $0x24] sm:$0xf]
    %v959 = vld [vmem:[#allocation7 + $0x28] sm:$0xf]
    %v960 = vld [vmem:[#allocation7 + $0x2c] sm:$0xf]
    %v961 = vld [vmem:[#allocation7 + $0x30] sm:$0xf]
    %v962 = vld [vmem:[#allocation7 + $0x34] sm:$0xf]
    %v963 = vld [vmem:[#allocation7 + $0x38] sm:$0xf]
    %v964 = vld [vmem:[#allocation7 + $0x3c] sm:$0xf]
    %v965 = vld [vmem:[%s7 + $0x3] ss:$0 sm:$0xff]
    %v982 = vunpack.c.l.b16 %v949
    %v983 = vunpack.c.l.b16 %v950
    %v984 = vunpack.c.l.b16 %v951
    %v985 = vunpack.c.l.b16 %v952
    %v986 = vunpack.c.l.b16 %v953
    %v987 = vunpack.c.l.b16 %v954
    %v988 = vunpack.c.l.b16 %v955
    %v989 = vunpack.c.l.b16 %v956
    %v990 = vunpack.c.l.b16 %v957
    %v991 = vunpack.c.l.b16 %v958
    %v992 = vunpack.c.l.b16 %v959
    %v993 = vunpack.c.l.b16 %v960
    %v994 = vunpack.c.l.b16 %v961
    %v995 = vunpack.c.l.b16 %v962
    %v996 = vunpack.c.l.b16 %v963
    %v997 = vunpack.c.l.b16 %v964
    %v998 = vpack.c.b16 %v983, %v982
    %v999 = vpack.c.b16 %v985, %v984
    %v1000 = vpack.c.b16 %v987, %v986
    %v1001 = vpack.c.b16 %v989, %v988
    %v1002 = vpack.c.b16 %v991, %v990
    %v1003 = vpack.c.b16 %v993, %v992
    %v1004 = vpack.c.b16 %v995, %v994
    %v1005 = vpack.c.b16 %v997, %v996
    %1014 = vmatprep.subr.bf16.mxu0 0
    %1015 = vmatpush1.bf16.msra.mxu0 %v998
    %1016 = vmatprep.subr.bf16.mxu0 0
    %1017 = vmatpush1.bf16.msra.mxu0 %v999
    %1018 = vmatprep.subr.bf16.mxu0 0
    %1019 = vmatpush1.bf16.msra.mxu0 %v1000
    %1020 = vmatprep.subr.bf16.mxu0 0
    %1021 = vmatpush1.bf16.msra.mxu0 %v1001
    %1022 = vmatprep.subr.bf16.mxu0 0
    %1023 = vmatpush1.bf16.msra.mxu0 %v1002
    %1024 = vmatprep.subr.bf16.mxu0 0
    %1025 = vmatpush1.bf16.msra.mxu0 %v1003
    %1026 = vmatprep.subr.bf16.mxu0 0
    %1027 = vmatpush1.bf16.msra.mxu0 %v1004
    %1028 = vmatprep.subr.bf16.mxu0 0
    %1029 = vmatpush1.bf16.msra.mxu0 %v1005
    %1030 = vmatprep.subr.bf16.mxu0 0
    %1031 = vmatpush1.bf16.msra.mxu0 0
    %1032 = vmatprep.subr.bf16.mxu0 0
    %1033 = vmatpush1.bf16.msra.mxu0 0
    %1034 = vmatprep.subr.bf16.mxu0 0
    %1035 = vmatpush1.bf16.msra.mxu0 0
    %1036 = vmatprep.subr.bf16.mxu0 0
    %1037 = vmatpush1.bf16.msra.mxu0 0
    %1038 = vmatprep.subr.bf16.mxu0 0
    %1039 = vmatpush1.bf16.msra.mxu0 0
    %1040 = vmatprep.subr.bf16.mxu0 0
    %1041 = vmatpush1.bf16.msra.mxu0 0
    %1042 = vmatprep.subr.bf16.mxu0 0
    %1043 = vmatpush1.bf16.msra.mxu0 0
    %1044 = vmatprep.subr.bf16.mxu0 0
    %1045 = vmatpush1.bf16.msra.mxu0 0
    %1046 = vmatprep.mubr.bf16.mxu0 0
    %1047 = vmatmul.mubr.bf16.gmra.mrb[0].mxu0 %v948
    %v1048 = vpop.f32.mrb[0].mxu0
    %v1049 = vadd.f32 %v965, %v1048
    %v1050 = vpop.f32.mrb[0].mxu0
    %v1051 = vpop.f32.mrb[0].mxu0
    %v1052 = vadd.f32 %v965, %v1051
    %v1053 = vpop.f32.mrb[0].mxu0
    %1054 = vdwg.mxu0
    %v1055 = vmax.f32 %v1049, 0.0
    %v1056 = vmax.f32 %v1052, 0.0
    %v1057 = vpack.c.bf16 %v1056, %v1055
    %v1058 = vld [vmem:[#allocation9] sm:$0xf]
    %v1059 = vld [vmem:[#allocation9 + $0x4] sm:$0xf]
    %v1060 = vld [vmem:[#allocation9 + $0x8] sm:$0xf]
    %v1061 = vld [vmem:[#allocation9 + $0xc] sm:$0xf]
    %v1062 = vld [vmem:[#allocation9 + $0x10] sm:$0xf]
    %v1063 = vld [vmem:[#allocation9 + $0x14] sm:$0xf]
    %v1064 = vld [vmem:[#allocation9 + $0x18] sm:$0xf]
    %v1065 = vld [vmem:[#allocation9 + $0x1c] sm:$0xf]
    %v1066 = vld [vmem:[#allocation9 + $0x20] sm:$0xf]
    %v1067 = vld [vmem:[#allocation9 + $0x24] sm:$0xf]
    %v1068 = vld [vmem:[#allocation9 + $0x28] sm:$0xf]
    %v1069 = vld [vmem:[#allocation9 + $0x2c] sm:$0xf]
    %v1070 = vld [vmem:[#allocation9 + $0x30] sm:$0xf]
    %v1071 = vld [vmem:[#allocation9 + $0x34] sm:$0xf]
    %v1072 = vld [vmem:[#allocation9 + $0x38] sm:$0xf]
    %v1073 = vld [vmem:[#allocation9 + $0x3c] sm:$0xf]
    %v1074 = vld [vmem:[%s7 + $0x4] ss:$0 sm:$0xff]
    %v1091 = vunpack.c.l.b16 %v1058
    %v1092 = vunpack.c.l.b16 %v1059
    %v1093 = vunpack.c.l.b16 %v1060
    %v1094 = vunpack.c.l.b16 %v1061
    %v1095 = vunpack.c.l.b16 %v1062
    %v1096 = vunpack.c.l.b16 %v1063
    %v1097 = vunpack.c.l.b16 %v1064
    %v1098 = vunpack.c.l.b16 %v1065
    %v1099 = vunpack.c.l.b16 %v1066
    %v1100 = vunpack.c.l.b16 %v1067
    %v1101 = vunpack.c.l.b16 %v1068
    %v1102 = vunpack.c.l.b16 %v1069
    %v1103 = vunpack.c.l.b16 %v1070
    %v1104 = vunpack.c.l.b16 %v1071
    %v1105 = vunpack.c.l.b16 %v1072
    %v1106 = vunpack.c.l.b16 %v1073
    %v1107 = vpack.c.b16 %v1092, %v1091
    %v1108 = vpack.c.b16 %v1094, %v1093
    %v1109 = vpack.c.b16 %v1096, %v1095
    %v1110 = vpack.c.b16 %v1098, %v1097
    %v1111 = vpack.c.b16 %v1100, %v1099
    %v1112 = vpack.c.b16 %v1102, %v1101
    %v1113 = vpack.c.b16 %v1104, %v1103
    %v1114 = vpack.c.b16 %v1106, %v1105
    %1123 = vmatprep.subr.bf16.mxu0 0
    %1124 = vmatpush1.bf16.msra.mxu0 %v1107
    %1125 = vmatprep.subr.bf16.mxu0 0
    %1126 = vmatpush1.bf16.msra.mxu0 %v1108
    %1127 = vmatprep.subr.bf16.mxu0 0
    %1128 = vmatpush1.bf16.msra.mxu0 %v1109
    %1129 = vmatprep.subr.bf16.mxu0 0
    %1130 = vmatpush1.bf16.msra.mxu0 %v1110
    %1131 = vmatprep.subr.bf16.mxu0 0
    %1132 = vmatpush1.bf16.msra.mxu0 %v1111
    %1133 = vmatprep.subr.bf16.mxu0 0
    %1134 = vmatpush1.bf16.msra.mxu0 %v1112
    %1135 = vmatprep.subr.bf16.mxu0 0
    %1136 = vmatpush1.bf16.msra.mxu0 %v1113
    %1137 = vmatprep.subr.bf16.mxu0 0
    %1138 = vmatpush1.bf16.msra.mxu0 %v1114
    %1139 = vmatprep.subr.bf16.mxu0 0
    %1140 = vmatpush1.bf16.msra.mxu0 0
    %1141 = vmatprep.subr.bf16.mxu0 0
    %1142 = vmatpush1.bf16.msra.mxu0 0
    %1143 = vmatprep.subr.bf16.mxu0 0
    %1144 = vmatpush1.bf16.msra.mxu0 0
    %1145 = vmatprep.subr.bf16.mxu0 0
    %1146 = vmatpush1.bf16.msra.mxu0 0
    %1147 = vmatprep.subr.bf16.mxu0 0
    %1148 = vmatpush1.bf16.msra.mxu0 0
    %1149 = vmatprep.subr.bf16.mxu0 0
    %1150 = vmatpush1.bf16.msra.mxu0 0
    %1151 = vmatprep.subr.bf16.mxu0 0
    %1152 = vmatpush1.bf16.msra.mxu0 0
    %1153 = vmatprep.subr.bf16.mxu0 0
    %1154 = vmatpush1.bf16.msra.mxu0 0
    %1155 = vmatprep.mubr.bf16.mxu0 0
    %1156 = vmatmul.mubr.bf16.gmra.mrb[0].mxu0 %v1057
    %v1157 = vpop.f32.mrb[0].mxu0
    %v1158 = vadd.f32 %v1074, %v1157
    %v1159 = vpop.f32.mrb[0].mxu0
    %v1160 = vpop.f32.mrb[0].mxu0
    %v1161 = vadd.f32 %v1074, %v1160
    %v1162 = vpop.f32.mrb[0].mxu0
    %1163 = vdwg.mxu0
    %v1164 = vmax.f32 %v1158, 0.0
    %v1165 = vmax.f32 %v1161, 0.0
    %v1166 = vpack.c.bf16 %v1165, %v1164
    %v1167 = vld [vmem:[#allocation10] sm:$0xf]
    %v1168 = vld [vmem:[#allocation10 + $0x4] sm:$0xf]
    %v1169 = vld [vmem:[#allocation10 + $0x8] sm:$0xf]
    %v1170 = vld [vmem:[#allocation10 + $0xc] sm:$0xf]
    %v1171 = vld [vmem:[#allocation10 + $0x10] sm:$0xf]
    %v1172 = vld [vmem:[#allocation10 + $0x14] sm:$0xf]
    %v1173 = vld [vmem:[#allocation10 + $0x18] sm:$0xf]
    %v1174 = vld [vmem:[#allocation10 + $0x1c] sm:$0xf]
    %v1175 = vld [vmem:[#allocation10 + $0x20] sm:$0xf]
    %v1176 = vld [vmem:[#allocation10 + $0x24] sm:$0xf]
    %v1177 = vld [vmem:[#allocation10 + $0x28] sm:$0xf]
    %v1178 = vld [vmem:[#allocation10 + $0x2c] sm:$0xf]
    %v1179 = vld [vmem:[#allocation10 + $0x30] sm:$0xf]
    %v1180 = vld [vmem:[#allocation10 + $0x34] sm:$0xf]
    %v1181 = vld [vmem:[#allocation10 + $0x38] sm:$0xf]
    %v1182 = vld [vmem:[#allocation10 + $0x3c] sm:$0xf]
    %v1183 = vld [vmem:[%s7 + $0x5] ss:$0 sm:$0xff]
    %v1200 = vunpack.c.l.b16 %v1167
    %v1201 = vunpack.c.l.b16 %v1168
    %v1202 = vunpack.c.l.b16 %v1169
    %v1203 = vunpack.c.l.b16 %v1170
    %v1204 = vunpack.c.l.b16 %v1171
    %v1205 = vunpack.c.l.b16 %v1172
    %v1206 = vunpack.c.l.b16 %v1173
    %v1207 = vunpack.c.l.b16 %v1174
    %v1208 = vunpack.c.l.b16 %v1175
    %v1209 = vunpack.c.l.b16 %v1176
    %v1210 = vunpack.c.l.b16 %v1177
    %v1211 = vunpack.c.l.b16 %v1178
    %v1212 = vunpack.c.l.b16 %v1179
    %v1213 = vunpack.c.l.b16 %v1180
    %v1214 = vunpack.c.l.b16 %v1181
    %v1215 = vunpack.c.l.b16 %v1182
    %v1216 = vpack.c.b16 %v1201, %v1200
    %v1217 = vpack.c.b16 %v1203, %v1202
    %v1218 = vpack.c.b16 %v1205, %v1204
    %v1219 = vpack.c.b16 %v1207, %v1206
    %v1220 = vpack.c.b16 %v1209, %v1208
    %v1221 = vpack.c.b16 %v1211, %v1210
    %v1222 = vpack.c.b16 %v1213, %v1212
    %v1223 = vpack.c.b16 %v1215, %v1214
    %1232 = vmatprep.subr.bf16.mxu0 0
    %1233 = vmatpush1.bf16.msra.mxu0 %v1216
    %1234 = vmatprep.subr.bf16.mxu0 0
    %1235 = vmatpush1.bf16.msra.mxu0 %v1217
    %1236 = vmatprep.subr.bf16.mxu0 0
    %1237 = vmatpush1.bf16.msra.mxu0 %v1218
    %1238 = vmatprep.subr.bf16.mxu0 0
    %1239 = vmatpush1.bf16.msra.mxu0 %v1219
    %1240 = vmatprep.subr.bf16.mxu0 0
    %1241 = vmatpush1.bf16.msra.mxu0 %v1220
    %1242 = vmatprep.subr.bf16.mxu0 0
    %1243 = vmatpush1.bf16.msra.mxu0 %v1221
    %1244 = vmatprep.subr.bf16.mxu0 0
    %1245 = vmatpush1.bf16.msra.mxu0 %v1222
    %1246 = vmatprep.subr.bf16.mxu0 0
    %1247 = vmatpush1.bf16.msra.mxu0 %v1223
    %1248 = vmatprep.subr.bf16.mxu0 0
    %1249 = vmatpush1.bf16.msra.mxu0 0
    %1250 = vmatprep.subr.bf16.mxu0 0
    %1251 = vmatpush1.bf16.msra.mxu0 0
    %1252 = vmatprep.subr.bf16.mxu0 0
    %1253 = vmatpush1.bf16.msra.mxu0 0
    %1254 = vmatprep.subr.bf16.mxu0 0
    %1255 = vmatpush1.bf16.msra.mxu0 0
    %1256 = vmatprep.subr.bf16.mxu0 0
    %1257 = vmatpush1.bf16.msra.mxu0 0
    %1258 = vmatprep.subr.bf16.mxu0 0
    %1259 = vmatpush1.bf16.msra.mxu0 0
    %1260 = vmatprep.subr.bf16.mxu0 0
    %1261 = vmatpush1.bf16.msra.mxu0 0
    %1262 = vmatprep.subr.bf16.mxu0 0
    %1263 = vmatpush1.bf16.msra.mxu0 0
    %1264 = vmatprep.mubr.bf16.mxu0 0
    %1265 = vmatmul.mubr.bf16.gmra.mrb[0].mxu0 %v1166
    %v1266 = vpop.f32.mrb[0].mxu0
    %v1267 = vadd.f32 %v1183, %v1266
    %v1268 = vpop.f32.mrb[0].mxu0
    %v1269 = vpop.f32.mrb[0].mxu0
    %v1270 = vadd.f32 %v1183, %v1269
    %v1271 = vpop.f32.mrb[0].mxu0
    %1272 = vdwg.mxu0
    %v1273 = vmax.f32 %v1267, 0.0
    %v1274 = vmax.f32 %v1270, 0.0
    %1275 = vst [vmem:[%s8] sm:$0xff] %v1273
    %1276 = vst [vmem:[%s8 + $0x8] sm:$0xff] %v1274
    // Predicated region
    $region58: #{ann_blocks_forward.1} parent=1 // pred_check
      _
    $region59: #{ann_blocks_forward.1} parent=1 // pred_check_branch
      %1278 = sbr.rel (0) target = $region61
    $region60: #{ann_blocks_forward.1} parent=1 // pred_region
      _
    $region61: #{ann_blocks_forward.1} parent=1 // pred_fallthru
      _
    // Predicated region
    $region62: #{ann_blocks_forward.1} parent=1 // pred_check
      _
    $region63: #{ann_blocks_forward.1} parent=1 // pred_check_branch
      %1280 = sbr.rel (0) target = $region65
    $region64: #{ann_blocks_forward.1} parent=1 // pred_region
      _
    $region65: #{ann_blocks_forward.1} parent=1 // pred_fallthru
      _
    %1281 = vsyncpa [#allocation3], 1
    %1282 = vsyncpa [#allocation5], 1
    %1283 = vsyncpa [#allocation8], 1
    %1284 = vsyncpa [#allocation11], 1

</llo_original>
